<compile_context>
chip_gen: v6e
topology: v6e:2x2x1
jax: 0.10.0
libtpu: 0.0.40
codegen_flags: <defaults>
</compile_context>

<pallas_src>
import jax
import jax.numpy as jnp
from jax.experimental import pallas as pl
from jax.experimental.pallas import tpu as pltpu

LENS = 8.0
INV_NORM = 0.125  # 1/8, exact power of two

_LANES = 128
_BLOCK_BYTES = 8 * 1024 * 1024        # ~8 MiB per operand per block
_VMEM_LIMIT_BYTES = 48 * 1024 * 1024  # in+out double-buffered (4x block) + headroom


def _multispike_kernel(x_ref, o_ref):
    x = x_ref[...]
    # Compute natively in bf16/f32; upcast anything else (ints, f16) to f32.
    if x.dtype not in (jnp.float32, jnp.bfloat16):
        x = x.astype(jnp.float32)
    spiked = jnp.floor(jnp.clip(x, 0.0, LENS) + 0.5)
    o_ref[...] = (spiked * INV_NORM).astype(o_ref.dtype)


def _dimension_semantics(grid_size):
    """CORE_PARALLEL on multi-TensorCore chips (v7x); 'parallel' elsewhere."""
    try:
        kind = jax.devices()[0].device_kind.lower()
    except Exception:  # pragma: no cover - detection is best-effort
        kind = ""
    if grid_size >= 2 and ("v7" in kind or "7x" in kind):
        return (pltpu.CORE_PARALLEL,)
    return ("parallel",)


def multispike_forward(x, donate=False):
    """Elementwise Multispike forward: floor(clamp(x,0,8)+0.5)/8, any shape."""
    orig_shape = x.shape
    n = x.size
    out_dtype = x.dtype if jnp.issubdtype(x.dtype, jnp.floating) else jnp.float32
    if n == 0:
        return jnp.zeros(orig_shape, out_dtype)

    in_itemsize = jnp.dtype(x.dtype).itemsize
    out_itemsize = jnp.dtype(out_dtype).itemsize
    itemsize = max(in_itemsize, out_itemsize)

    flat = x.reshape(-1)  # zero-copy for contiguous row-major arrays
    cost = pl.CostEstimate(
        flops=5 * n,
        transcendentals=0,
        bytes_accessed=n * (in_itemsize + out_itemsize),
    )
    aliases = {0: 0} if (donate and x.dtype == out_dtype) else {}

    if n % _LANES == 0:
        # Lane-dense (rows, 128) layout; byte-budgeted row tiles (dtype-aware).
        rows = n // _LANES
        budget_rows = max(32, (_BLOCK_BYTES // (_LANES * itemsize)) // 32 * 32)
        tile_rows = rows if rows <= budget_rows else budget_rows
        grid = (pl.cdiv(rows, tile_rows),)
        out2d = pl.pallas_call(
            _multispike_kernel,
            out_shape=jax.ShapeDtypeStruct((rows, _LANES), out_dtype),
            grid=grid,
            in_specs=[pl.BlockSpec((tile_rows, _LANES), lambda i: (i, 0))],
            out_specs=pl.BlockSpec((tile_rows, _LANES), lambda i: (i, 0)),
            compiler_params=pltpu.CompilerParams(
                dimension_semantics=_dimension_semantics(grid[0]),
                vmem_limit_bytes=_VMEM_LIMIT_BYTES,
            ),
            cost_estimate=cost,
            input_output_aliases=aliases,
        )(flat.reshape(rows, _LANES))
        return out2d.reshape(orig_shape)

    # Ragged fallback (n not a multiple of 128): keep the array 1-D.  The block
    # is either the whole array or a multiple of 1024 elements, so the last
    # (partial) block is handled by Pallas' masked load/store — no pad,
    # concatenate, or slice passes through HBM.
    budget_elems = max(1024, (_BLOCK_BYTES // itemsize) // 1024 * 1024)
    block = n if n <= budget_elems else budget_elems
    grid = (pl.cdiv(n, block),)
    out1d = pl.pallas_call(
        _multispike_kernel,
        out_shape=jax.ShapeDtypeStruct((n,), out_dtype),
        grid=grid,
        in_specs=[pl.BlockSpec((block,), lambda i: (i,))],
        out_specs=pl.BlockSpec((block,), lambda i: (i,)),
        compiler_params=pltpu.CompilerParams(
            dimension_semantics=_dimension_semantics(grid[0]),
            vmem_limit_bytes=_VMEM_LIMIT_BYTES,
        ),
        cost_estimate=cost,
        input_output_aliases=aliases,
    )(flat)
    return out1d.reshape(orig_shape)


def _reference(x):
    """f32-compute reference matching the PyTorch definition."""
    xf = x.astype(jnp.float32)
    y = jnp.floor(jnp.clip(xf, 0.0, LENS) + 0.5) / 8.0
    out_dtype = x.dtype if jnp.issubdtype(x.dtype, jnp.floating) else jnp.float32
    return y.astype(out_dtype)


if __name__ == "__main__":
    key = jax.random.PRNGKey(0)
    k1, k2 = jax.random.split(key)

    # NCHW feature-map input consistent with the classification model.
    x = jax.random.normal(k1, (2, 4, 16, 16), dtype=jnp.float32) * 6.0
    y = multispike_forward(x)
    jax.block_until_ready(y)
    y_ref = _reference(x)
    assert y.shape == x.shape and y.dtype == x.dtype
    assert jnp.allclose(y, y_ref, atol=1e-6), "f32 mismatch vs reference"

    # bf16 + non-multiple-of-128 size exercises the native-bf16 path and the
    # 1-D ragged path (no padding / extra HBM passes).
    x2 = (jax.random.normal(k2, (3, 5, 7, 11), dtype=jnp.float32) * 6.0).astype(
        jnp.bfloat16
    )
    y2 = multispike_forward(x2)
    jax.block_until_ready(y2)
    y2_ref = _reference(x2)
    assert y2.shape == x2.shape and y2.dtype == x2.dtype
    assert jnp.allclose(
        y2.astype(jnp.float32), y2_ref.astype(jnp.float32), atol=1e-6
    ), "bf16 mismatch vs reference"

    # donate=True path (input_output_aliases) under jit — typical activation use.
    y3 = jax.jit(lambda a: multispike_forward(a, donate=True))(x)
    jax.block_until_ready(y3)
    assert jnp.allclose(y3, y_ref, atol=1e-6), "donated-path mismatch vs reference"

    print("KERNEL_OK")
</pallas_src>

<mosaic_0001>
module attributes {stable_mosaic.version = 11 : i64} {
  func.func @_multispike_kernel(%arg0: i32, %arg1: memref<16x128xf32, #tpu.memory_space<vmem>>, %arg2: memref<16x128xf32, #tpu.memory_space<vmem>>) attributes {dimension_semantics = [#tpu.dimension_semantics<parallel>], iteration_bounds = array<i64: 1>, scalar_prefetch = 0 : i64, scratch_operands = 0 : i64, tpu.core_type = #tpu.core_type<tc>, window_params = [{transform_indices = @transform_0, window_bounds = array<i64: 16, 128>}, {transform_indices = @transform_1, window_bounds = array<i64: 16, 128>}]} {
    %c0 = arith.constant 0 : index
    %c0_0 = arith.constant 0 : index
    %0 = vector.load %arg1[%c0, %c0_0] : memref<16x128xf32, #tpu.memory_space<vmem>>, vector<16x128xf32>
    %cst = arith.constant 0.000000e+00 : f32
    %cst_1 = arith.constant 8.000000e+00 : f32
    %1 = vector.broadcast %cst : f32 to vector<16x128xf32>
    %2 = arith.maximumf %1, %0 : vector<16x128xf32>
    %3 = vector.broadcast %cst_1 : f32 to vector<16x128xf32>
    %4 = arith.minimumf %3, %2 : vector<16x128xf32>
    %cst_2 = arith.constant 5.000000e-01 : f32
    %5 = vector.broadcast %cst_2 : f32 to vector<16x128xf32>
    %6 = arith.addf %4, %5 : vector<16x128xf32>
    %7 = math.floor %6 : vector<16x128xf32>
    %cst_3 = arith.constant 1.250000e-01 : f32
    %8 = vector.broadcast %cst_3 : f32 to vector<16x128xf32>
    %9 = arith.mulf %7, %8 : vector<16x128xf32>
    %c0_4 = arith.constant 0 : index
    %c0_5 = arith.constant 0 : index
    %10 = vector.load %arg2[%c0_4, %c0_5] : memref<16x128xf32, #tpu.memory_space<vmem>>, vector<16x128xf32>
    tpu.vector_store %arg2[%c0_4, %c0_5], %9 {strides = array<i32>} : memref<16x128xf32, #tpu.memory_space<vmem>>, vector<16x128xf32>,
    return
  }
  func.func @transform_0(%arg0: i32) -> (i32, i32) {
    %c0_i32 = arith.constant 0 : i32
    %c0_i32_0 = arith.constant 0 : i32
    return %arg0, %c0_i32 : i32, i32
  }
  func.func @transform_1(%arg0: i32) -> (i32, i32) {
    %c0_i32 = arith.constant 0 : i32
    %c0_i32_0 = arith.constant 0 : i32
    return %arg0, %c0_i32 : i32, i32
  }
}

</mosaic_0001>

<llo_original>
// kernel: tpu_custom_call.1
$region0: #{tpu_custom_call.1}
  #allocation0 [shape = 'u32[]', space=smem, size = 0x4, offset = 0x4, fixed_abs, tag = 'smem constant byte address 0x4 - core index']
  #allocation1 [shape = 'u32[144,128]{1,0:T(1,128)}', space=vmem, size = 0x12000, scoped, tag = 'internal scratch']
  %s0 = inlined_call_operand.hbm [shape: f32[16,128], index: 0, kind: input, shape index: {}]
  %s1 = inlined_call_operand.hbm [shape: f32[16,128], index: 1, kind: output, shape index: {}]
  %s2 = sld [smem:[#allocation0]]
  $region18: #{tpu_custom_call.1} parent=0
    _
  %s4 = ssub.s32 1, %s2
  %s5 = scalar_select 0, %s4, %s2
  $region1: #{tpu_custom_call.1} parent=0
    #allocation2 [shape = 'u8[8192]{0}', space=vmem, size = 0x2000, scoped, tag = 'input window, operand 0, single buffered']
    #allocation3 [shape = 's32[1]{0}', space=sflag, size = 0x4, scoped, tag = 'scoped memory for tpu_custom_call.1']
    #allocation4 [shape = 's32[1]{0}', space=sflag, size = 0x4, scoped, tag = 'scoped memory for tpu_custom_call.1']
    #allocation5 [shape = 'u8[8192]{0}', space=vmem, size = 0x2000, scoped, tag = 'output window, operand 0, single buffered']
    %6 = vsyncpa [#allocation3], 0
    %7 = vsyncpa [#allocation4], 0
    // Predicated region
    $region2: #{tpu_custom_call.1} parent=1 // pred_check
      _
    $region3: #{tpu_custom_call.1} parent=1 // pred_check_branch
      %9 = sbr.rel (0) target = $region5
    $region4: #{tpu_custom_call.1} parent=1 // pred_region
      %s11 = ssub.s32 256, 256
      %12 = vsyncadd [#allocation3], %s11
      %s13 = sshll.u32 [#allocation2], 4
      %s14 = int_to_ptr.vmem [resolvable:$true] %s13
      %19 = dma.hbm_to_vmem [thread:$0]  %s0, 256, %s14, [#allocation3], 128, 128, 8
    $region5: #{tpu_custom_call.1} parent=1 // pred_fallthru
      _
    // Predicated region
    $region6: #{tpu_custom_call.1} parent=1 // pred_check
      _
    $region7: #{tpu_custom_call.1} parent=1 // pred_check_branch
      %21 = sbr.rel (0) target = $region9
    $region8: #{tpu_custom_call.1} parent=1 // pred_region
      %22 = dma.done [#allocation3], 256
    $region9: #{tpu_custom_call.1} parent=1 // pred_fallthru
      _
    %v23 = vld [vmem:[#allocation2] sm:$0xff]
    %v24 = vld [vmem:[#allocation2 + $0x8] sm:$0xff]
    %v25 = vmax.f32 %v23, 0.0
    %v26 = vmax.f32 %v24, 0.0
    %v27 = vmin.f32 %v25, 8.0
    %v28 = vmin.f32 %v26, 8.0
    %v29 = vadd.f32 %v27, 0.5
    %v30 = vadd.f32 %v28, 0.5
    %v31 = vfloor.f32 %v29
    %v32 = vfloor.f32 %v30
    %v33 = vmul.f32 %v31, 0.125
    %v34 = vmul.f32 %v32, 0.125
    %35 = vst [vmem:[#allocation5] sm:$0xff] %v33
    %36 = vst [vmem:[#allocation5 + $0x8] sm:$0xff] %v34
    // Predicated region
    $region10: #{tpu_custom_call.1} parent=1 // pred_check
      _
    $region11: #{tpu_custom_call.1} parent=1 // pred_check_branch
      %38 = sbr.rel (0) target = $region13
    $region12: #{tpu_custom_call.1} parent=1 // pred_region
      %s40 = ssub.s32 256, 256
      %41 = vsyncadd [#allocation4], %s40
      %s42 = sshll.u32 [#allocation5], 4
      %s43 = int_to_ptr.vmem [resolvable:$true] %s42
      %48 = dma.vmem_to_hbm [thread:$0]  %s43, 256, %s1, [#allocation4], 128, 128, 8
    $region13: #{tpu_custom_call.1} parent=1 // pred_fallthru
      _
    // Predicated region
    $region14: #{tpu_custom_call.1} parent=1 // pred_check
      _
    $region15: #{tpu_custom_call.1} parent=1 // pred_check_branch
      %50 = sbr.rel (0) target = $region17
    $region16: #{tpu_custom_call.1} parent=1 // pred_region
      %51 = dma.done [#allocation4], 256
    $region17: #{tpu_custom_call.1} parent=1 // pred_fallthru
      _
    %52 = vsyncpa [#allocation3], 1
    %53 = vsyncpa [#allocation4], 1

</llo_original>
